<compile_context>
chip_gen: v5e
topology: v5e:2x2
jax: 0.10.0
libtpu: 0.0.40
codegen_flags: <defaults>
</compile_context>

<pallas_src>
import functools
import math

import jax
import jax.numpy as jnp
from jax.experimental import pallas as pl
from jax.experimental.pallas import tpu as pltpu


def _round_up(a, b):
    return (a + b - 1) // b * b


def _vmem_limit_bytes():
    """~75% of this chip's VMEM (fallback: 48 MiB, safe on v7x's 64 MiB)."""
    try:
        cap = pltpu.get_tpu_info().vmem_capacity_bytes
    except Exception:
        cap = 64 * 1024 * 1024
    return max(32 * 1024 * 1024, int(cap) * 3 // 4)


def _label_smoothing_kernel(x_ref, tgt_ref, out_ref, *, padding_idx,
                            smooth_val, confidence, row_const, n_rows):
    p = pl.program_id(0)
    j = pl.program_id(1)

    @pl.when(j == 0)
    def _():
        out_ref[...] = jnp.zeros_like(out_ref)

    x = x_ref[...]                      # (br, V) log-probs, native dtype
    tgt = tgt_ref[...]                  # (br, 1) int32 class ids
    br, v = x.shape

    # Smoothed-target weights, built in x's dtype (bf16 stays packed on
    # v6e/v7x; Mosaic widens as needed on v5e).  (1, V) iota broadcasts
    # against the (br, 1) targets.
    col = jax.lax.broadcasted_iota(jnp.int32, (1, v), 1)
    sv = jnp.asarray(smooth_val, dtype=x.dtype)
    conf = jnp.asarray(confidence, dtype=x.dtype)
    w = jnp.where(col == tgt, conf, sv)                     # (br, V)
    w = jnp.where(col == padding_idx, jnp.asarray(0, dtype=x.dtype), w)

    # Single fused weighted reduction; widen to f32 only for the accumulate.
    cross = jnp.sum((x * w).astype(jnp.float32), axis=-1, keepdims=True)
    per_row = jnp.float32(row_const) - cross                # (br, 1)

    # Rows with target == padding_idx, padded target rows, and ragged-tail
    # garbage rows of x contribute exactly 0.  Select on per_row (not on x)
    # so NaN/Inf garbage cannot leak through the reduction.
    row_ids = ((p * pl.num_programs(1) + j) * br
               + jax.lax.broadcasted_iota(jnp.int32, (br, 1), 0))
    valid = (tgt != padding_idx) & (row_ids < n_rows)
    out_ref[...] += jnp.where(valid, per_row, jnp.float32(0.0))


def label_smoothing_loss(x, target, *, size, padding_idx, smoothing,
                         block_rows=None, num_parallel=1):
    """x: (N, size) log-probs (any float dtype); target: (N,) int. Scalar loss.

    Preconditions: 0 <= target[i] < size (out-of-range targets are not checked).
    """
    N, V = x.shape
    assert V == size

    confidence = 1.0 - smoothing
    if size > 2:
        smooth_val = smoothing / (size - 2)
    else:
        assert smoothing == 0.0, "smoothing > 0 requires size > 2"
        smooth_val = 0.0

    # sum_{td>0} td*log(td) per valid row, computed at trace time (guarded).
    row_const = 0.0
    if confidence > 0.0:
        row_const += confidence * math.log(confidence)
    if smooth_val > 0.0:
        row_const += (size - 2) * smooth_val * math.log(smooth_val)

    # Block sizing: one x block ~ vmem_limit/3 so the double-buffered stream
    # plus target/output blocks stay inside the scoped VMEM budget.
    vmem_limit = _vmem_limit_bytes()                 # ~48 MiB v7x / ~96 MiB v5e,v6e
    block_budget = vmem_limit // 3                   # ~16 MiB v7x / ~32 MiB v5e,v6e
    itemsize = jnp.dtype(x.dtype).itemsize
    rows_fit = max(8, (block_budget // max(1, V * itemsize)) // 8 * 8)
    br = min(rows_fit, _round_up(N, 8))
    if block_rows is not None:
        br = min(br, max(8, _round_up(block_rows, 8)))

    nblk = -(-N // br)                               # number of row blocks of x
    num_parallel = max(1, min(num_parallel, nblk))
    nblk_pad = _round_up(nblk, num_parallel)
    nj = nblk_pad // num_parallel                    # reduction steps per segment

    # Pad ONLY the (tiny) target array; padded rows use padding_idx and thus
    # contribute exactly 0.  x is never copied/padded.
    tgt = target.astype(jnp.int32)
    n_tgt = nblk_pad * br
    if n_tgt != N:
        tgt = jnp.concatenate(
            [tgt, jnp.full((n_tgt - N,), padding_idx, dtype=jnp.int32)])
    tgt2d = tgt.reshape(n_tgt, 1)

    kernel = functools.partial(
        _label_smoothing_kernel,
        padding_idx=padding_idx,
        smooth_val=smooth_val,
        confidence=confidence,
        row_const=row_const,
        n_rows=N,
    )

    # Clamp the x block index so a remainder segment never issues a fully
    # out-of-bounds DMA (the duplicated block is masked to zero in-kernel).
    max_blk = nblk - 1
    x_index_map = lambda p, j: (jnp.minimum(p * nj + j, max_blk), 0)
    t_index_map = lambda p, j: (p * nj + j, 0)

    partial_out = pl.pallas_call(
        kernel,
        out_shape=jax.ShapeDtypeStruct((num_parallel * br, 1), jnp.float32),
        grid_spec=pltpu.PrefetchScalarGridSpec(
            num_scalar_prefetch=0,
            grid=(num_parallel, nj),
            in_specs=[
                pl.BlockSpec((br, V), x_index_map),
                pl.BlockSpec((br, 1), t_index_map),
            ],
            # Output block depends only on p -> resident accumulator across j.
            out_specs=pl.BlockSpec((br, 1), lambda p, j: (p, 0)),
        ),
        # TODO(synk): on v7x, CORE_PARALLEL on the leading axis (with
        # num_parallel = #TensorCores) would guarantee the 2-TC split.
        compiler_params=pltpu.CompilerParams(
            dimension_semantics=("parallel", "arbitrary"),
            vmem_limit_bytes=vmem_limit),
    )(x, tgt2d)

    return jnp.sum(partial_out)


def _reference_loss(x, target, *, size, padding_idx, smoothing):
    confidence = 1.0 - smoothing
    N, V = x.shape
    col = jnp.arange(V, dtype=jnp.int32)[None, :]
    tgt = target.astype(jnp.int32)[:, None]
    td = jnp.full((N, V), smoothing / (size - 2), dtype=jnp.float32)
    td = jnp.where(col == tgt, confidence, td)
    td = jnp.where(col == padding_idx, 0.0, td)
    td = jnp.where(tgt == padding_idx, 0.0, td)
    safe_log = jnp.log(jnp.where(td > 0, td, 1.0))
    return jnp.sum(jnp.where(td > 0, td * (safe_log - x.astype(jnp.float32)), 0.0))


if __name__ == "__main__":
    SIZE = 128         # vocab size (x.size(1) == self.size); lane-aligned
    PADDING_IDX = 0
    SMOOTHING = 0.1
    N = 50             # flattened batch * seq length (ragged w.r.t. 8-row tiles)

    key = jax.random.PRNGKey(0)
    k_logits, k_tgt = jax.random.split(key)

    logits = jax.random.normal(k_logits, (N, SIZE), dtype=jnp.float32)
    x = jax.nn.log_softmax(logits, axis=-1)          # KLDivLoss expects log-probs
    target = jax.random.randint(k_tgt, (N,), 0, SIZE, dtype=jnp.int32)
    # make sure a couple of rows hit padding_idx to exercise the index_fill_ path
    target = target.at[3].set(PADDING_IDX).at[10].set(PADDING_IDX)

    ref = _reference_loss(
        x, target, size=SIZE, padding_idx=PADDING_IDX, smoothing=SMOOTHING)

    # Default tiling: one big block, ragged tail masked in-kernel.
    loss = label_smoothing_loss(
        x, target, size=SIZE, padding_idx=PADDING_IDX, smoothing=SMOOTHING)
    loss = jax.block_until_ready(loss)
    assert jnp.allclose(loss, ref, rtol=1e-5, atol=1e-3), (loss, ref)

    # Small tiles: exercises the multi-step resident-accumulator path.
    loss_small = label_smoothing_loss(
        x, target, size=SIZE, padding_idx=PADDING_IDX, smoothing=SMOOTHING,
        block_rows=8)
    loss_small = jax.block_until_ready(loss_small)
    assert jnp.allclose(loss_small, ref, rtol=1e-5, atol=1e-3), (loss_small, ref)

    # Two "parallel" segments with a remainder block: exercises the clamped
    # x index_map + padded-target masking path.
    loss_par = label_smoothing_loss(
        x, target, size=SIZE, padding_idx=PADDING_IDX, smoothing=SMOOTHING,
        block_rows=24, num_parallel=2)
    loss_par = jax.block_until_ready(loss_par)
    assert jnp.allclose(loss_par, ref, rtol=1e-5, atol=1e-3), (loss_par, ref)

    # TODO(synk): self.true_dist side buffer is not materialized (loss uses the
    # closed form); expose it only if a caller actually needs it.
    # NOTE: for tiny vocab (V << 128) plain XLA is preferable to this kernel
    # (lane under-utilization); kept as a kernel here for the self-test.
    print("KERNEL_OK")
</pallas_src>

<mosaic_0001>
module attributes {stable_mosaic.version = 11 : i64} {
  func.func @_label_smoothing_kernel(%arg0: i32, %arg1: i32, %arg2: memref<56x128xf32, #tpu.memory_space<vmem>>, %arg3: memref<56x1xi32, #tpu.memory_space<vmem>>, %arg4: memref<56x1xf32, #tpu.memory_space<vmem>>) attributes {dimension_semantics = [#tpu.dimension_semantics<parallel>, #tpu.dimension_semantics<arbitrary>], iteration_bounds = array<i64: 1, 1>, scalar_prefetch = 0 : i64, scratch_operands = 0 : i64, tpu.core_type = #tpu.core_type<tc>, window_params = [{transform_indices = @transform_0, window_bounds = array<i64: 56, 128>}, {transform_indices = @transform_1, window_bounds = array<i64: 56, 1>}, {transform_indices = @transform_2, window_bounds = array<i64: 56, 1>}]} {
    %c0_i32 = arith.constant 0 : i32
    %0 = arith.cmpi eq, %arg1, %c0_i32 : i32
    %1 = arith.extui %0 : i1 to i32
    %c0_i32_0 = arith.constant 0 : i32
    %2 = arith.cmpi ne, %1, %c0_i32_0 : i32
    scf.if %2 {
      %cst_15 = arith.constant 0.000000e+00 : f32
      %39 = vector.broadcast %cst_15 : f32 to vector<56x1xf32>
      %c0_16 = arith.constant 0 : index
      %c0_17 = arith.constant 0 : index
      %40 = vector.load %arg4[%c0_16, %c0_17] : memref<56x1xf32, #tpu.memory_space<vmem>>, vector<56x1xf32>
      tpu.vector_store %arg4[%c0_16, %c0_17], %39 {strides = array<i32>} : memref<56x1xf32, #tpu.memory_space<vmem>>, vector<56x1xf32>,
    } else {
    }
    %c0 = arith.constant 0 : index
    %c0_1 = arith.constant 0 : index
    %3 = vector.load %arg2[%c0, %c0_1] : memref<56x128xf32, #tpu.memory_space<vmem>>, vector<56x128xf32>
    %c0_2 = arith.constant 0 : index
    %c0_3 = arith.constant 0 : index
    %4 = vector.load %arg3[%c0_2, %c0_3] : memref<56x1xi32, #tpu.memory_space<vmem>>, vector<56x1xi32>
    %5 = tpu.iota {dimensions = array<i32: 1>} : vector<1x128xi32>
    %6 = vector.broadcast %5 : vector<1x128xi32> to vector<56x128xi32>
    %7 = vector.broadcast %4 : vector<56x1xi32> to vector<56x128xi32>
    %8 = arith.cmpi eq, %6, %7 : vector<56x128xi32>
    %cst = arith.constant 0.899999976 : f32
    %cst_4 = arith.constant 7.93650805E-4 : f32
    %9 = vector.broadcast %cst : f32 to vector<56x128xf32>
    %10 = vector.broadcast %cst_4 : f32 to vector<56x128xf32>
    %11 = arith.select %8, %9, %10 : vector<56x128xi1>, vector<56x128xf32>
    %c0_i32_5 = arith.constant 0 : i32
    %12 = vector.broadcast %c0_i32_5 : i32 to vector<1x128xi32>
    %13 = arith.cmpi eq, %5, %12 : vector<1x128xi32>
    %cst_6 = arith.constant 0.000000e+00 : f32
    %14 = vector.shape_cast %13 : vector<1x128xi1> to vector<1x128xi1>
    %15 = vector.broadcast %14 : vector<1x128xi1> to vector<56x128xi1>
    %16 = vector.broadcast %cst_6 : f32 to vector<56x128xf32>
    %17 = arith.select %15, %16, %11 : vector<56x128xi1>, vector<56x128xf32>
    %18 = arith.mulf %3, %17 : vector<56x128xf32>
    %cst_7 = arith.constant dense<0.000000e+00> : vector<56xf32>
    %19 = vector.multi_reduction <add>, %18, %cst_7 [1] : vector<56x128xf32> to vector<56xf32>
    %20 = vector.shape_cast %19 : vector<56xf32> to vector<56x1xf32>
    %cst_8 = arith.constant -0.808711171 : f32
    %21 = vector.broadcast %cst_8 : f32 to vector<56x1xf32>
    %22 = arith.subf %21, %20 : vector<56x1xf32>
    %c1_i32 = arith.constant 1 : i32
    %23 = arith.muli %arg0, %c1_i32 : i32
    %24 = arith.addi %23, %arg1 : i32
    %c56_i32 = arith.constant 56 : i32
    %25 = arith.muli %24, %c56_i32 : i32
    %26 = tpu.iota {dimensions = array<i32: 0>} : vector<56x1xi32>
    %27 = vector.broadcast %25 : i32 to vector<56x1xi32>
    %28 = arith.addi %27, %26 : vector<56x1xi32>
    %c0_i32_9 = arith.constant 0 : i32
    %29 = vector.broadcast %c0_i32_9 : i32 to vector<56x1xi32>
    %30 = arith.cmpi ne, %4, %29 : vector<56x1xi32>
    %c50_i32 = arith.constant 50 : i32
    %31 = vector.broadcast %c50_i32 : i32 to vector<56x1xi32>
    %32 = arith.cmpi slt, %28, %31 : vector<56x1xi32>
    %33 = arith.andi %30, %32 : vector<56x1xi1>
    %c0_10 = arith.constant 0 : index
    %c0_11 = arith.constant 0 : index
    %34 = vector.load %arg4[%c0_10, %c0_11] : memref<56x1xf32, #tpu.memory_space<vmem>>, vector<56x1xf32>
    %cst_12 = arith.constant 0.000000e+00 : f32
    %35 = vector.broadcast %cst_12 : f32 to vector<56x1xf32>
    %36 = arith.select %33, %22, %35 : vector<56x1xi1>, vector<56x1xf32>
    %37 = arith.addf %34, %36 : vector<56x1xf32>
    %c0_13 = arith.constant 0 : index
    %c0_14 = arith.constant 0 : index
    %38 = vector.load %arg4[%c0_13, %c0_14] : memref<56x1xf32, #tpu.memory_space<vmem>>, vector<56x1xf32>
    tpu.vector_store %arg4[%c0_13, %c0_14], %37 {strides = array<i32>} : memref<56x1xf32, #tpu.memory_space<vmem>>, vector<56x1xf32>,
    return
  }
  func.func @transform_0(%arg0: i32, %arg1: i32) -> (i32, i32) {
    %c1_i32 = arith.constant 1 : i32
    %0 = arith.muli %arg0, %c1_i32 : i32
    %1 = arith.addi %0, %arg1 : i32
    %c0_i32 = arith.constant 0 : i32
    %2 = arith.minsi %1, %c0_i32 : i32
    %c0_i32_0 = arith.constant 0 : i32
    %c0_i32_1 = arith.constant 0 : i32
    return %2, %c0_i32_0 : i32, i32
  }
  func.func @transform_1(%arg0: i32, %arg1: i32) -> (i32, i32) {
    %c1_i32 = arith.constant 1 : i32
    %0 = arith.muli %arg0, %c1_i32 : i32
    %1 = arith.addi %0, %arg1 : i32
    %c0_i32 = arith.constant 0 : i32
    %c0_i32_0 = arith.constant 0 : i32
    return %1, %c0_i32 : i32, i32
  }
  func.func @transform_2(%arg0: i32, %arg1: i32) -> (i32, i32) {
    %c0_i32 = arith.constant 0 : i32
    %c0_i32_0 = arith.constant 0 : i32
    return %arg0, %c0_i32 : i32, i32
  }
}

</mosaic_0001>

<llo_original>
// kernel: tpu_custom_call.1
$region0: #{tpu_custom_call.1}
  #allocation0 [shape = 'u32[]', space=smem, size = 0x4, offset = 0x4, fixed_abs, tag = 'smem constant byte address 0x4 - core index']
  #allocation1 [shape = 'u32[72,128]{1,0:T(1,128)}', space=vmem, size = 0x9000, scoped, tag = 'internal scratch']
  %s0 = inlined_call_operand.vmem [shape: f32[50,128], index: 0, kind: input, shape index: {}]
  %s1 = inlined_call_operand.vmem [shape: s32[56,1], index: 1, kind: input, shape index: {}]
  %s2 = inlined_call_operand.vmem [shape: f32[56,1], index: 2, kind: output, shape index: {}]
  %s3 = sld [smem:[#allocation0]]
  $region22: #{tpu_custom_call.1} parent=0
    _
  %s5 = ssub.s32 1, %s3
  %s6 = scalar_select 0, %s5, %s3
  // Predicated region
  $region2: #{tpu_custom_call.1} parent=0 // pred_check
    _
  $region3: #{tpu_custom_call.1} parent=0 // pred_check_branch
    %8 = sbr.rel (0) target = $region5
  $region4: #{tpu_custom_call.1} parent=0 // pred_region
    %s9 = sadd.s32 0, 0
    %p10 = scmp.lt.s32.totalorder %s9, 0
    %s11 = scalar_select %p10, %s9, 0
    %s12 = smul.u32 7, %s11
    %p13 = scmp.lt.s32.totalorder %s12, 6
    %s14 = scalar_select %p13, %s12, 6
    %s15 = smul.addr %s14, 8
    %s16 = scalar_lea.vmem %s0, %s15
    %s17 = sadd.s32 0, 0
    %p18 = scmp.lt.s32.totalorder %s17, 0
    %s19 = scalar_select %p18, %s17, 0
    %s20 = smul.u32 7, %s19
  $region5: #{tpu_custom_call.1} parent=0 // pred_fallthru
    _
  // Predicated region
  $region6: #{tpu_custom_call.1} parent=0 // pred_check
    _
  $region7: #{tpu_custom_call.1} parent=0 // pred_check_branch
    %22 = sbr.rel (0) target = $region9
  $region8: #{tpu_custom_call.1} parent=0 // pred_region
    %s23 = sadd.s32 0, 0
    %s24 = smul.u32 7, %s23
    %p25 = scmp.lt.s32.totalorder %s24, 6
    %s26 = scalar_select %p25, %s24, 6
    %s27 = smul.addr %s26, 8
    %s28 = scalar_lea.vmem %s1, %s27
    %s29 = sadd.s32 0, 0
    %s30 = smul.u32 7, %s29
  $region9: #{tpu_custom_call.1} parent=0 // pred_fallthru
    _
  %s31 = sadd.s32 0, 0
  %p32 = scmp.lt.s32.totalorder %s31, 0
  %s33 = scalar_select %p32, %s31, 0
  %s34 = smul.u32 7, %s33
  %p35 = scmp.lt.s32.totalorder %s34, 6
  %s36 = scalar_select %p35, %s34, 6
  %s37 = smul.addr %s36, 8
  %s38 = scalar_lea.vmem %s0, %s37
  %s39 = sadd.s32 0, 0
  %s40 = smul.u32 7, %s39
  %p41 = scmp.lt.s32.totalorder %s40, 6
  %s42 = scalar_select %p41, %s40, 6
  %s43 = smul.addr %s42, 8
  %s44 = scalar_lea.vmem %s1, %s43
  %s45 = sadd.s32 0, 0
  %p46 = scmp.lt.s32.totalorder %s45, 0
  %s47 = scalar_select %p46, %s45, 0
  %s48 = smul.u32 7, %s47
  %p49 = scmp.lt.s32.totalorder %s48, 6
  %s50 = scalar_select %p49, %s48, 6
  %s51 = smul.addr %s50, 8
  %s52 = scalar_lea.vmem %s0, %s51
  %s53 = sadd.s32 0, 0
  %p54 = scmp.lt.s32.totalorder %s53, 0
  %s55 = scalar_select %p54, %s53, 0
  %s56 = smul.u32 7, %s55
  %s57 = sadd.s32 0, 0
  %s58 = smul.u32 7, %s57
  %p59 = scmp.lt.s32.totalorder %s58, 6
  %s60 = scalar_select %p59, %s58, 6
  %s61 = smul.addr %s60, 8
  %s62 = scalar_lea.vmem %s1, %s61
  %s63 = sadd.s32 0, 0
  %s64 = smul.u32 7, %s63
  %p65 = scmp.eq.s32.totalorder 0, 0
  // Predicated region
  $region10: #{tpu_custom_call.1} parent=0 // pred_check
    %p66 = pneg %p65
  $region11: #{tpu_custom_call.1} parent=0 // pred_check_branch
    %68 = sbr.rel (%p66) target = $region13
  $region12: #{tpu_custom_call.1} parent=0 // pred_region
    %vm69 = vcmask 7168
    %70 = vst.msk [vmem:[%s2] sm:$0xff] %vm69, 0.0
    %71 = vst.msk [vmem:[%s2 + $0x8] sm:$0xff] %vm69, 0.0
    %72 = vst.msk [vmem:[%s2 + $0x10] sm:$0xff] %vm69, 0.0
    %73 = vst.msk [vmem:[%s2 + $0x18] sm:$0xff] %vm69, 0.0
    %74 = vst.msk [vmem:[%s2 + $0x20] sm:$0xff] %vm69, 0.0
    %75 = vst.msk [vmem:[%s2 + $0x28] sm:$0xff] %vm69, 0.0
    %76 = vst.msk [vmem:[%s2 + $0x30] sm:$0xff] %vm69, 0.0
  $region13: #{tpu_custom_call.1} parent=0 // pred_fallthru
    _
  %v77 = vld [vmem:[%s52] sm:$0xff]
  %v78 = vld [vmem:[%s52 + $0x8] sm:$0xff]
  %v79 = vld [vmem:[%s52 + $0x10] sm:$0xff]
  %v80 = vld [vmem:[%s52 + $0x18] sm:$0xff]
  %v81 = vld [vmem:[%s52 + $0x20] sm:$0xff]
  %v82 = vld [vmem:[%s52 + $0x28] sm:$0xff]
  %v83 = vld [vmem:[%s52 + $0x30] sm:$0xff]
  %v84 = vld [vmem:[%s62] sm:$0xff]
  %v85 = vld [vmem:[%s62 + $0x8] sm:$0xff]
  %v86 = vld [vmem:[%s62 + $0x10] sm:$0xff]
  %v87 = vld [vmem:[%s62 + $0x18] sm:$0xff]
  %v88 = vld [vmem:[%s62 + $0x20] sm:$0xff]
  %v89 = vld [vmem:[%s62 + $0x28] sm:$0xff]
  %v90 = vld [vmem:[%s62 + $0x30] sm:$0xff]
  %v91 = vlaneseq
  %v92 = vand.u32 %v91, 127
  %93 = vset.pattern.permute.xlu0 0
  %94 = vperm.xlu0 %93, %v84
  %v95 = vpop.permute.xlu0 %94
  %96 = vset.pattern.permute.xlu0 0
  %97 = vperm.xlu0 %96, %v85
  %v98 = vpop.permute.xlu0 %97
  %99 = vset.pattern.permute.xlu0 0
  %100 = vperm.xlu0 %99, %v86
  %v101 = vpop.permute.xlu0 %100
  %102 = vset.pattern.permute.xlu0 0
  %103 = vperm.xlu0 %102, %v87
  %v104 = vpop.permute.xlu0 %103
  %105 = vset.pattern.permute.xlu0 0
  %106 = vperm.xlu0 %105, %v88
  %v107 = vpop.permute.xlu0 %106
  %108 = vset.pattern.permute.xlu0 0
  %109 = vperm.xlu0 %108, %v89
  %v110 = vpop.permute.xlu0 %109
  %111 = vset.pattern.permute.xlu0 0
  %112 = vperm.xlu0 %111, %v90
  %v113 = vpop.permute.xlu0 %112
  %vm114 = vcmp.eq.s32.totalorder %v92, %v95
  %vm115 = vcmp.eq.s32.totalorder %v92, %v98
  %vm116 = vcmp.eq.s32.totalorder %v92, %v101
  %vm117 = vcmp.eq.s32.totalorder %v92, %v104
  %vm118 = vcmp.eq.s32.totalorder %v92, %v107
  %vm119 = vcmp.eq.s32.totalorder %v92, %v110
  %vm120 = vcmp.eq.s32.totalorder %v92, %v113
  %v121 = vsel %vm114, 0.9, 0.0007936508
  %v122 = vsel %vm115, 0.9, 0.0007936508
  %v123 = vsel %vm116, 0.9, 0.0007936508
  %v124 = vsel %vm117, 0.9, 0.0007936508
  %v125 = vsel %vm118, 0.9, 0.0007936508
  %v126 = vsel %vm119, 0.9, 0.0007936508
  %v127 = vsel %vm120, 0.9, 0.0007936508
  %vm128 = vcmp.eq.s32.totalorder %v92, 0
  %v129 = vsel %vm128, 1, 0
  %vm130 = vcmp.eq.s32.totalorder %v129, 1
  %v131 = vsel %vm130, 0.0, %v121
  %v132 = vsel %vm130, 0.0, %v122
  %v133 = vsel %vm130, 0.0, %v123
  %v134 = vsel %vm130, 0.0, %v124
  %v135 = vsel %vm130, 0.0, %v125
  %v136 = vsel %vm130, 0.0, %v126
  %v137 = vsel %vm130, 0.0, %v127
  %v138 = vmul.f32 %v77, %v131
  %v139 = vmul.f32 %v78, %v132
  %v140 = vmul.f32 %v79, %v133
  %v141 = vmul.f32 %v80, %v134
  %v142 = vmul.f32 %v81, %v135
  %v143 = vmul.f32 %v82, %v136
  %v144 = vmul.f32 %v83, %v137
  %145 = vadd.xlane.f32.xlu0 %v138
  %v146 = vpop.xlane.xlu0 %145
  %147 = vadd.xlane.f32.xlu0 %v139
  %v148 = vpop.xlane.xlu0 %147
  %149 = vadd.xlane.f32.xlu0 %v140
  %v150 = vpop.xlane.xlu0 %149
  %151 = vadd.xlane.f32.xlu0 %v141
  %v152 = vpop.xlane.xlu0 %151
  %153 = vadd.xlane.f32.xlu0 %v142
  %v154 = vpop.xlane.xlu0 %153
  %155 = vadd.xlane.f32.xlu0 %v143
  %v156 = vpop.xlane.xlu0 %155
  %157 = vadd.xlane.f32.xlu0 %v144
  %v158 = vpop.xlane.xlu0 %157
  %v159 = vsub.f32 -0.8087112, %v146
  %v160 = vsub.f32 -0.8087112, %v148
  %v161 = vsub.f32 -0.8087112, %v150
  %v162 = vsub.f32 -0.8087112, %v152
  %v163 = vsub.f32 -0.8087112, %v154
  %v164 = vsub.f32 -0.8087112, %v156
  %v165 = vsub.f32 -0.8087112, %v158
  %s166 = sadd.s32 0, 0
  %s167 = smul.u32 %s166, 56
  %v168 = vlaneseq
  %v169 = vshrl.u32 %v168, 7
  %v170 = vadd.s32 %v169, 8
  %v171 = vadd.s32 %v169, 16
  %v172 = vadd.s32 %v169, 24
  %v173 = vadd.s32 %v169, 32
  %v174 = vadd.s32 %v169, 40
  %v175 = vadd.s32 %v169, 48
  %v176 = vstv %s167
  %v177 = vadd.s32 %v176, %v169
  %v178 = vadd.s32 %v176, %v170
  %v179 = vadd.s32 %v176, %v171
  %v180 = vadd.s32 %v176, %v172
  %v181 = vadd.s32 %v176, %v173
  %v182 = vadd.s32 %v176, %v174
  %v183 = vadd.s32 %v176, %v175
  %vm184 = vcmp.ne.s32.totalorder %v84, 0
  %vm185 = vcmp.ne.s32.totalorder %v85, 0
  %vm186 = vcmp.ne.s32.totalorder %v86, 0
  %vm187 = vcmp.ne.s32.totalorder %v87, 0
  %vm188 = vcmp.ne.s32.totalorder %v88, 0
  %vm189 = vcmp.ne.s32.totalorder %v89, 0
  %vm190 = vcmp.ne.s32.totalorder %v90, 0
  %vm191 = vcmp.lt.s32.totalorder %v177, 50
  %vm192 = vcmp.lt.s32.totalorder %v178, 50
  %vm193 = vcmp.lt.s32.totalorder %v179, 50
  %vm194 = vcmp.lt.s32.totalorder %v180, 50
  %vm195 = vcmp.lt.s32.totalorder %v181, 50
  %vm196 = vcmp.lt.s32.totalorder %v182, 50
  %vm197 = vcmp.lt.s32.totalorder %v183, 50
  %vm198 = vmand %vm184, %vm191
  %vm199 = vmand %vm185, %vm192
  %vm200 = vmand %vm186, %vm193
  %vm201 = vmand %vm187, %vm194
  %vm202 = vmand %vm188, %vm195
  %vm203 = vmand %vm189, %vm196
  %vm204 = vmand %vm190, %vm197
  %v205 = vld [vmem:[%s2] sm:$0xff]
  %v206 = vld [vmem:[%s2 + $0x8] sm:$0xff]
  %v207 = vld [vmem:[%s2 + $0x10] sm:$0xff]
  %v208 = vld [vmem:[%s2 + $0x18] sm:$0xff]
  %v209 = vld [vmem:[%s2 + $0x20] sm:$0xff]
  %v210 = vld [vmem:[%s2 + $0x28] sm:$0xff]
  %v211 = vld [vmem:[%s2 + $0x30] sm:$0xff]
  %v212 = vsel %vm198, %v159, 0.0
  %v213 = vsel %vm199, %v160, 0.0
  %v214 = vsel %vm200, %v161, 0.0
  %v215 = vsel %vm201, %v162, 0.0
  %v216 = vsel %vm202, %v163, 0.0
  %v217 = vsel %vm203, %v164, 0.0
  %v218 = vsel %vm204, %v165, 0.0
  %v219 = vadd.f32 %v205, %v212
  %v220 = vadd.f32 %v206, %v213
  %v221 = vadd.f32 %v207, %v214
  %v222 = vadd.f32 %v208, %v215
  %v223 = vadd.f32 %v209, %v216
  %v224 = vadd.f32 %v210, %v217
  %v225 = vadd.f32 %v211, %v218
  %vm226 = vcmask 7168
  %227 = vst.msk [vmem:[%s2] sm:$0xff] %vm226, %v219
  %228 = vst.msk [vmem:[%s2 + $0x8] sm:$0xff] %vm226, %v220
  %229 = vst.msk [vmem:[%s2 + $0x10] sm:$0xff] %vm226, %v221
  %230 = vst.msk [vmem:[%s2 + $0x18] sm:$0xff] %vm226, %v222
  %231 = vst.msk [vmem:[%s2 + $0x20] sm:$0xff] %vm226, %v223
  %232 = vst.msk [vmem:[%s2 + $0x28] sm:$0xff] %vm226, %v224
  %233 = vst.msk [vmem:[%s2 + $0x30] sm:$0xff] %vm226, %v225
  // Predicated region
  $region14: #{tpu_custom_call.1} parent=0 // pred_check
    _
  $region15: #{tpu_custom_call.1} parent=0 // pred_check_branch
    %235 = sbr.rel (0) target = $region17
  $region16: #{tpu_custom_call.1} parent=0 // pred_region
    _
  $region17: #{tpu_custom_call.1} parent=0 // pred_fallthru
    _
  // Predicated region
  $region18: #{tpu_custom_call.1} parent=0 // pred_check
    _
  $region19: #{tpu_custom_call.1} parent=0 // pred_check_branch
    %237 = sbr.rel (0) target = $region21
  $region20: #{tpu_custom_call.1} parent=0 // pred_region
    _
  $region21: #{tpu_custom_call.1} parent=0 // pred_fallthru
    _

</llo_original>
